<compile_context>
chip_gen: v7x
topology: tpu7x:2x2x1
jax: 0.10.0
libtpu: 0.0.40
codegen_flags: <defaults>
</compile_context>

<pallas_src>
import functools
import math

import jax
import jax.numpy as jnp
from jax import lax
from jax.experimental import pallas as pl
from jax.experimental.pallas import tpu as pltpu


# --------------------------- Generation-aware tiling -------------------------

def _detect_big_vmem():
    # v5e/v5p/v6e have 128 MiB VMEM; v7x has 64 MiB. Unknown chips get the
    # conservative (small-VMEM) configuration.
    try:
        kind = jax.devices()[0].device_kind.lower()
    except Exception:
        return False
    return ("v5" in kind) or ("v6" in kind)


_BIG_VMEM = _detect_big_vmem()
# bf16 streaming per GEMM grid step:
#   big:   (512*1024 + 1024*256)*2B*2buf + 512*256*4B acc ~= 3.6 MiB
#   small: (256*512  +  512*256)*2B*2buf + 256*256*4B acc ~= 1.3 MiB
_TM, _TN, _TK = (512, 256, 1024) if _BIG_VMEM else (256, 256, 512)


def _mosaic_params(dims):
    kw = dict(dimension_semantics=dims)
    if _BIG_VMEM:
        kw["vmem_limit_bytes"] = 96 << 20
    return pltpu.CompilerParams(**kw)


def _tile(dim, target, align):
    """Largest tile <= target that divides `dim` and is a multiple of `align`.

    Falls back to the full dimension (always a legal Mosaic block shape) only
    when no aligned divisor exists, so we never emit an illegal block shape.
    """
    if dim <= target:
        return dim
    t = (target // align) * align
    while t >= align:
        if dim % t == 0:
            return t
        t -= align
    return dim


# ----------------------------- Tiled GEMM kernel -----------------------------

def _matmul_kernel(x_ref, w_ref, o_ref, acc_ref):
    @pl.when(pl.program_id(2) == 0)
    def _():
        acc_ref[...] = jnp.zeros_like(acc_ref)

    x = x_ref[...]
    w = w_ref[...]
    # Trace-time no-ops when the operands already stream bf16 (the normal case).
    if x.dtype != jnp.bfloat16:
        x = x.astype(jnp.bfloat16)
    if w.dtype != jnp.bfloat16:
        w = w.astype(jnp.bfloat16)
    acc_ref[...] += jnp.dot(x, w, preferred_element_type=jnp.float32)

    @pl.when(pl.program_id(2) == pl.num_programs(2) - 1)
    def _():
        o_ref[...] = acc_ref[...].astype(o_ref.dtype)


def pallas_matmul(x, w, out_dtype=None):
    M, K = x.shape
    K2, N = w.shape
    assert K == K2
    out_dtype = out_dtype or x.dtype
    tm = _tile(M, _TM, 8)
    tn = _tile(N, _TN, 128)
    tk = _tile(K, _TK, 128)
    nbytes = (M * K * x.dtype.itemsize + K * N * w.dtype.itemsize
              + M * N * jnp.dtype(out_dtype).itemsize)
    cost = pl.CostEstimate(flops=2 * M * N * K, transcendentals=0,
                           bytes_accessed=nbytes)
    return pl.pallas_call(
        _matmul_kernel,
        out_shape=jax.ShapeDtypeStruct((M, N), out_dtype),
        grid_spec=pltpu.PrefetchScalarGridSpec(
            num_scalar_prefetch=0,
            grid=(M // tm, N // tn, K // tk),
            in_specs=[pl.BlockSpec((tm, tk), lambda i, j, k: (i, k)),
                      pl.BlockSpec((tk, tn), lambda i, j, k: (k, j))],
            out_specs=pl.BlockSpec((tm, tn), lambda i, j, k: (i, j)),
            scratch_shapes=[pltpu.VMEM((tm, tn), jnp.float32)]),
        compiler_params=_mosaic_params(("parallel", "parallel", "arbitrary")),
        cost_estimate=cost,
    )(x, w)


# ----------------------- Fused LayerNorm + GEMM kernel -----------------------

def _ln_matmul_kernel(x_ref, g_ref, b_ref, w_ref, o_ref, xn_ref, *, eps):
    # Normalize the (tm, K) row tile once per row block (j == 0) into a bf16
    # VMEM scratch; every output-column tile j reuses it (no redundant VPU/EUP
    # work per column tile).
    @pl.when(pl.program_id(1) == 0)
    def _():
        x = x_ref[...].astype(jnp.float32)
        mu = jnp.mean(x, axis=-1, keepdims=True)
        xc = x - mu
        var = jnp.mean(xc * xc, axis=-1, keepdims=True)
        xn = xc * lax.rsqrt(var + eps) * g_ref[...] + b_ref[...]
        xn_ref[...] = xn.astype(jnp.bfloat16)

    o_ref[...] = jnp.dot(xn_ref[...], w_ref[...],
                         preferred_element_type=jnp.float32).astype(o_ref.dtype)


def pallas_ln_matmul(x, gamma, beta, w, eps, out_dtype=None):
    M, K = x.shape
    _, N = w.shape
    out_dtype = out_dtype or x.dtype
    # Keep tm modest: this kernel holds (tm, K) x + (tm, K) scratch + (K, tn) w
    # with full K, so cap the row tile independently of the big-VMEM GEMM tile.
    tm = _tile(M, min(_TM, 256), 8)
    tn = _tile(N, _TN, 128)
    kernel = functools.partial(_ln_matmul_kernel, eps=eps)
    nbytes = (M * K * x.dtype.itemsize + K * N * w.dtype.itemsize
              + M * N * jnp.dtype(out_dtype).itemsize)
    cost = pl.CostEstimate(flops=2 * M * N * K + 8 * M * K, transcendentals=M,
                           bytes_accessed=nbytes)
    return pl.pallas_call(
        kernel,
        out_shape=jax.ShapeDtypeStruct((M, N), out_dtype),
        grid=(M // tm, N // tn),
        in_specs=[pl.BlockSpec((tm, K), lambda i, j: (i, 0)),
                  pl.BlockSpec((1, K), lambda i, j: (0, 0)),
                  pl.BlockSpec((1, K), lambda i, j: (0, 0)),
                  pl.BlockSpec((K, tn), lambda i, j: (0, j))],
        out_specs=pl.BlockSpec((tm, tn), lambda i, j: (i, j)),
        scratch_shapes=[pltpu.VMEM((tm, K), jnp.bfloat16)],
        # j must be "arbitrary": the scratch filled at j == 0 is reused for all j.
        compiler_params=_mosaic_params(("parallel", "arbitrary")),
        cost_estimate=cost,
    )(x, gamma, beta, w)


# ---------------- Attention (per batch x query-tile, fused RoPE + Wo) --------

def _attn_kernel(*refs, heads, rotary):
    if rotary:
        q_ref, kv_ref, rope_q_ref, rope_k_ref, wo_ref, o_ref = refs
    else:
        q_ref, kv_ref, wo_ref, o_ref = refs

    E = q_ref.shape[2]
    D = E // heads
    half = D // 2

    if rotary:
        cos_q = rope_q_ref[:, :half]            # (tq, half) f32
        sin_q = rope_q_ref[:, half:]
        cos_k = rope_k_ref[:, :half]            # (T, half) f32
        sin_k = rope_k_ref[:, half:]

    dn_qk = (((1,), (1,)), ((), ()))            # contract on D (no k transpose)
    dn_pv = (((1,), (0,)), ((), ()))

    head_out = []
    for h in range(heads):                      # static unroll; slices are ref views
        q = q_ref[0, :, h * D:(h + 1) * D]      # (tq, D) bf16
        k = kv_ref[0, :, h * D:(h + 1) * D]     # (T, D) bf16
        v = kv_ref[0, :, E + h * D:E + (h + 1) * D]   # (T, D) bf16

        if rotary:
            # Rotate-half RoPE in f32 on the VPU (the 1/sqrt(D) scale is folded
            # into Wq at init).  QK^T is split over the two rotated halves so
            # no concatenate is needed on the score path; MXU operands are bf16
            # with f32 accumulation.
            qf = q.astype(jnp.float32)
            kf = k.astype(jnp.float32)
            q1, q2 = qf[:, :half], qf[:, half:]
            k1, k2 = kf[:, :half], kf[:, half:]
            qa = (q1 * cos_q - q2 * sin_q).astype(jnp.bfloat16)
            qb = (q1 * sin_q + q2 * cos_q).astype(jnp.bfloat16)
            ka = (k1 * cos_k - k2 * sin_k).astype(jnp.bfloat16)
            kb = (k1 * sin_k + k2 * cos_k).astype(jnp.bfloat16)
            s = (lax.dot_general(qa, ka, dn_qk, preferred_element_type=jnp.float32)
                 + lax.dot_general(qb, kb, dn_qk, preferred_element_type=jnp.float32))
        else:
            s = lax.dot_general(q.astype(jnp.bfloat16), k.astype(jnp.bfloat16),
                                dn_qk, preferred_element_type=jnp.float32)

        # f32 softmax (VPU); approx reciprocal runs on the EUP slot.
        m = jnp.max(s, axis=-1, keepdims=True)
        p = jnp.exp(s - m)
        denom = jnp.sum(p, axis=-1, keepdims=True)
        p = (p * pl.reciprocal(denom, approx=True)).astype(jnp.bfloat16)

        o_h = lax.dot_general(p, v.astype(jnp.bfloat16), dn_pv,
                              preferred_element_type=jnp.float32)     # (tq, D)
        head_out.append(o_h)

    # One lane-dense (tq, E) context, then a single K=E Wo GEMM (better MXU
    # occupancy than `heads` small K=D matmuls) and one lane-dense HBM write.
    ctx_heads = jnp.concatenate(head_out, axis=-1).astype(jnp.bfloat16)
    out = jnp.dot(ctx_heads, wo_ref[...], preferred_element_type=jnp.float32)
    o_ref[0] = out.astype(o_ref.dtype)


def pallas_attention(q, kv, rope_q, rope_k, wo, *, heads, rotary, out_dtype):
    B, S, E = q.shape
    _, T, _ = kv.shape
    tq = _tile(S, 256, 8)
    kernel = functools.partial(_attn_kernel, heads=heads, rotary=rotary)

    in_specs = [pl.BlockSpec((1, tq, E), lambda b, i: (b, i, 0)),
                pl.BlockSpec((1, T, 2 * E), lambda b, i: (b, 0, 0))]
    args = [q, kv]
    if rotary:
        D = E // heads
        in_specs += [pl.BlockSpec((tq, D), lambda b, i: (i, 0)),
                     pl.BlockSpec((T, D), lambda b, i: (0, 0))]
        args += [rope_q, rope_k]
    in_specs += [pl.BlockSpec((E, E), lambda b, i: (0, 0))]
    args += [wo]

    # TODO(synk): for production-sized T, add KV tiling with an online-softmax
    # (flash-style) reduction axis so the per-step (tq, T) score tile stays
    # bounded on v7x's 64 MiB VMEM.
    return pl.pallas_call(
        kernel,
        out_shape=jax.ShapeDtypeStruct((B, S, E), out_dtype),
        grid=(B, S // tq),
        in_specs=in_specs,
        out_specs=pl.BlockSpec((1, tq, E), lambda b, i: (b, i, 0)),
        compiler_params=_mosaic_params(("parallel", "parallel")),
    )(*args)


# ------------------------------ Model pieces ------------------------------

def rope_table_packed(seq, dim, base=10000.0):
    # Same exponent convention as the reference: base**(arange(half)/half).
    half = dim // 2
    inv_freq = 1.0 / (base ** (jnp.arange(half, dtype=jnp.float32) / half))
    t = jnp.arange(seq, dtype=jnp.float32)
    freqs = jnp.outer(t, inv_freq)                     # (seq, half)
    # Pack [cos | sin] into one lane-dense (seq, dim) table (one DMA per call).
    return jnp.concatenate([jnp.cos(freqs), jnp.sin(freqs)], axis=-1)


def multihead_attention(x, ctx, p, heads, rotary, ln=None,
                        out_dtype=jnp.bfloat16):
    B, S, E = x.shape
    _, T, _ = ctx.shape
    assert E % heads == 0
    D = E // heads

    x2d = x.reshape(B * S, E)
    ctx2d = ctx.reshape(B * T, E)

    # Q projection (with prenorm fused in when requested); K/V as one packed GEMM.
    if ln is not None:
        q2d = pallas_ln_matmul(x2d, ln["g"], ln["b"], p["wq"], ln["eps"],
                               out_dtype=jnp.bfloat16)
    else:
        q2d = pallas_matmul(x2d, p["wq"], out_dtype=jnp.bfloat16)
    kv2d = pallas_matmul(ctx2d, p["wkv"], out_dtype=jnp.bfloat16)

    q = q2d.reshape(B, S, E)                           # free reshapes (no transpose)
    kv = kv2d.reshape(B, T, 2 * E)

    rope_q = rope_table_packed(S, D) if rotary else None
    rope_k = rope_table_packed(T, D) if rotary else None
    return pallas_attention(q, kv, rope_q, rope_k, p["wo"],
                            heads=heads, rotary=rotary, out_dtype=out_dtype)


def dm_transformer_block(x, ctx, params):
    # bf16 activation streaming end-to-end; LN / RoPE / softmax math stays f32
    # inside the kernels and every matmul accumulates in f32.
    x = x.astype(jnp.bfloat16)
    ctx = ctx.astype(jnp.bfloat16)
    ln = {"g": params["ln_g"], "b": params["ln_b"], "eps": params["ln_eps"]}
    # x = attn(LayerNorm(x), ctx)  -- prenorm fused into the rotary Q projection.
    h = multihead_attention(x, ctx, params["attn"], params["heads"],
                            rotary=True, ln=ln, out_dtype=jnp.bfloat16)
    # TODO(synk): AssociativeMemorySelector internals are not public;
    # approximated by scaled-dot-product attention (same I/O shape).
    return multihead_attention(h, ctx, params["dmem"], params["heads"],
                               rotary=False, out_dtype=jnp.float32)


# ------------------------------- Param init --------------------------------

def init_params(key, embed, heads, eps=1e-5):
    d_head = embed // heads
    qscale = 1.0 / math.sqrt(d_head)   # softmax 1/sqrt(D) folded into Wq

    def proj_set(k):
        ks = jax.random.split(k, 4)
        wq = 0.02 * jax.random.normal(ks[0], (embed, embed), jnp.float32) * qscale
        wk = 0.02 * jax.random.normal(ks[1], (embed, embed), jnp.float32)
        wv = 0.02 * jax.random.normal(ks[2], (embed, embed), jnp.float32)
        wo = 0.02 * jax.random.normal(ks[3], (embed, embed), jnp.float32)
        # Weights are stored bf16 (half the HBM bytes per GEMM); K and V are
        # fused into a single (E, 2E) weight for one packed KV GEMM.
        return {"wq": wq.astype(jnp.bfloat16),
                "wkv": jnp.concatenate([wk, wv], axis=1).astype(jnp.bfloat16),
                "wo": wo.astype(jnp.bfloat16)}

    k_attn, k_dmem = jax.random.split(key)
    return {
        "heads": heads,
        "ln_eps": eps,
        "ln_g": jnp.ones((1, embed), jnp.float32),
        "ln_b": jnp.zeros((1, embed), jnp.float32),
        "attn": proj_set(k_attn),
        "dmem": proj_set(k_dmem),
    }


# ---------------------------------- Main -----------------------------------

if __name__ == "__main__":
    B, S, T, E, H = 2, 8, 8, 32, 4   # batch, q-seq, kv-seq, embed, heads

    key = jax.random.PRNGKey(0)
    kx, kc, kp = jax.random.split(key, 3)
    x = jax.random.normal(kx, (B, S, E), jnp.float32)
    ctx = jax.random.normal(kc, (B, T, E), jnp.float32)
    params = init_params(kp, E, H)

    out = dm_transformer_block(x, ctx, params)
    out = jax.block_until_ready(out)
    assert out.shape == (B, S, E)
    assert out.dtype == jnp.float32
    assert bool(jnp.all(jnp.isfinite(out)))
    print("KERNEL_OK")
</pallas_src>

<mosaic_0001>
module attributes {stable_mosaic.version = 11 : i64} {
  func.func @_ln_matmul_kernel(%arg0: i32, %arg1: i32, %arg2: memref<16x32xbf16, #tpu.memory_space<vmem>>, %arg3: memref<1x32xf32, #tpu.memory_space<vmem>>, %arg4: memref<1x32xf32, #tpu.memory_space<vmem>>, %arg5: memref<32x32xbf16, #tpu.memory_space<vmem>>, %arg6: memref<16x32xbf16, #tpu.memory_space<vmem>>, %arg7: memref<16x32xbf16, #tpu.memory_space<vmem>>) attributes {dimension_semantics = [#tpu.dimension_semantics<parallel>, #tpu.dimension_semantics<arbitrary>], iteration_bounds = array<i64: 1, 1>, scalar_prefetch = 0 : i64, scratch_operands = 1 : i64, tpu.core_type = #tpu.core_type<tc>, window_params = [{transform_indices = @transform_0, window_bounds = array<i64: 16, 32>}, {pipeline_mode = #tpu.pipeline_mode<synchronous>, transform_indices = @transform_1, window_bounds = array<i64: 1, 32>}, {pipeline_mode = #tpu.pipeline_mode<synchronous>, transform_indices = @transform_2, window_bounds = array<i64: 1, 32>}, {transform_indices = @transform_3, window_bounds = array<i64: 32, 32>}, {transform_indices = @transform_4, window_bounds = array<i64: 16, 32>}]} {
    %c0_i32 = arith.constant 0 : i32
    %0 = arith.cmpi eq, %arg1, %c0_i32 : i32
    %1 = arith.extui %0 : i1 to i32
    %c0_i32_0 = arith.constant 0 : i32
    %2 = arith.cmpi ne, %1, %c0_i32_0 : i32
    scf.if %2 {
      %c0_6 = arith.constant 0 : index
      %c0_7 = arith.constant 0 : index
      %8 = vector.load %arg2[%c0_6, %c0_7] : memref<16x32xbf16, #tpu.memory_space<vmem>>, vector<16x32xbf16>
      %9 = arith.extf %8 : vector<16x32xbf16> to vector<16x32xf32>
      %cst_8 = arith.constant dense<0.000000e+00> : vector<16xf32>
      %10 = vector.multi_reduction <add>, %9, %cst_8 [1] : vector<16x32xf32> to vector<16xf32>
      %11 = vector.shape_cast %10 : vector<16xf32> to vector<16x1xf32>
      %cst_9 = arith.constant 3.200000e+01 : f32
      %12 = vector.broadcast %cst_9 : f32 to vector<16x1xf32>
      %13 = arith.divf %11, %12 : vector<16x1xf32>
      %14 = vector.broadcast %13 : vector<16x1xf32> to vector<16x32xf32>
      %15 = arith.subf %9, %14 : vector<16x32xf32>
      %16 = arith.mulf %15, %15 : vector<16x32xf32>
      %cst_10 = arith.constant dense<0.000000e+00> : vector<16xf32>
      %17 = vector.multi_reduction <add>, %16, %cst_10 [1] : vector<16x32xf32> to vector<16xf32>
      %18 = vector.shape_cast %17 : vector<16xf32> to vector<16x1xf32>
      %cst_11 = arith.constant 3.200000e+01 : f32
      %19 = vector.broadcast %cst_11 : f32 to vector<16x1xf32>
      %20 = arith.divf %18, %19 : vector<16x1xf32>
      %cst_12 = arith.constant 9.99999974E-6 : f32
      %21 = vector.broadcast %cst_12 : f32 to vector<16x1xf32>
      %22 = arith.addf %20, %21 : vector<16x1xf32>
      %23 = math.rsqrt %22 : vector<16x1xf32>
      %24 = vector.broadcast %23 : vector<16x1xf32> to vector<16x32xf32>
      %25 = arith.mulf %15, %24 : vector<16x32xf32>
      %c0_13 = arith.constant 0 : index
      %c0_14 = arith.constant 0 : index
      %26 = vector.load %arg3[%c0_13, %c0_14] : memref<1x32xf32, #tpu.memory_space<vmem>>, vector<1x32xf32>
      %27 = vector.broadcast %26 : vector<1x32xf32> to vector<16x32xf32>
      %28 = arith.mulf %25, %27 : vector<16x32xf32>
      %c0_15 = arith.constant 0 : index
      %c0_16 = arith.constant 0 : index
      %29 = vector.load %arg4[%c0_15, %c0_16] : memref<1x32xf32, #tpu.memory_space<vmem>>, vector<1x32xf32>
      %30 = vector.broadcast %29 : vector<1x32xf32> to vector<16x32xf32>
      %31 = arith.addf %28, %30 : vector<16x32xf32>
      %32 = arith.truncf %31 : vector<16x32xf32> to vector<16x32xbf16>
      %c0_17 = arith.constant 0 : index
      %c0_18 = arith.constant 0 : index
      %33 = vector.load %arg7[%c0_17, %c0_18] : memref<16x32xbf16, #tpu.memory_space<vmem>>, vector<16x32xbf16>
      tpu.vector_store %arg7[%c0_17, %c0_18], %32 {strides = array<i32>} : memref<16x32xbf16, #tpu.memory_space<vmem>>, vector<16x32xbf16>,
    } else {
    }
    %c0 = arith.constant 0 : index
    %c0_1 = arith.constant 0 : index
    %3 = vector.load %arg7[%c0, %c0_1] : memref<16x32xbf16, #tpu.memory_space<vmem>>, vector<16x32xbf16>
    %c0_2 = arith.constant 0 : index
    %c0_3 = arith.constant 0 : index
    %4 = vector.load %arg5[%c0_2, %c0_3] : memref<32x32xbf16, #tpu.memory_space<vmem>>, vector<32x32xbf16>
    %cst = arith.constant dense<0.000000e+00> : vector<16x32xf32>
    %5 = tpu.matmul %3, %4, %cst {dimension_numbers = #tpu.dot_dimension_numbers<[1], [0], [0], [1], [0, 0, 1, 1], [], []>} : vector<16x32xbf16>, vector<32x32xbf16>, vector<16x32xf32> -> vector<16x32xf32>
    %6 = arith.truncf %5 : vector<16x32xf32> to vector<16x32xbf16>
    %c0_4 = arith.constant 0 : index
    %c0_5 = arith.constant 0 : index
    %7 = vector.load %arg6[%c0_4, %c0_5] : memref<16x32xbf16, #tpu.memory_space<vmem>>, vector<16x32xbf16>
    tpu.vector_store %arg6[%c0_4, %c0_5], %6 {strides = array<i32>} : memref<16x32xbf16, #tpu.memory_space<vmem>>, vector<16x32xbf16>,
    return
  }
  func.func @transform_0(%arg0: i32, %arg1: i32) -> (i32, i32) {
    %c0_i32 = arith.constant 0 : i32
    %c0_i32_0 = arith.constant 0 : i32
    return %arg0, %c0_i32 : i32, i32
  }
  func.func @transform_1(%arg0: i32, %arg1: i32) -> (i32, i32) {
    %c0_i32 = arith.constant 0 : i32
    %c0_i32_0 = arith.constant 0 : i32
    %c0_i32_1 = arith.constant 0 : i32
    return %c0_i32, %c0_i32_0 : i32, i32
  }
  func.func @transform_2(%arg0: i32, %arg1: i32) -> (i32, i32) {
    %c0_i32 = arith.constant 0 : i32
    %c0_i32_0 = arith.constant 0 : i32
    %c0_i32_1 = arith.constant 0 : i32
    return %c0_i32, %c0_i32_0 : i32, i32
  }
  func.func @transform_3(%arg0: i32, %arg1: i32) -> (i32, i32) {
    %c0_i32 = arith.constant 0 : i32
    %c0_i32_0 = arith.constant 0 : i32
    return %c0_i32, %arg1 : i32, i32
  }
  func.func @transform_4(%arg0: i32, %arg1: i32) -> (i32, i32) {
    %c0_i32 = arith.constant 0 : i32
    return %arg0, %arg1 : i32, i32
  }
}

</mosaic_0001>

<llo_original>
// kernel: tpu_custom_call.1
$region0: #{tpu_custom_call.1}
  #allocation0 [shape = 'u32[]', space=smem, size = 0x4, offset = 0x4, fixed_abs, tag = 'smem constant byte address 0x4 - core index']
  #allocation1 [shape = 'u32[144,128]{1,0:T(1,128)}', space=vmem, size = 0x12000, scoped, tag = 'internal scratch']
  #allocation2 [shape = 'bf16[16,32]{1,0:T(16,128)(2,1)}', space=vmem, size = 0x1000, scoped, tag = 'scratch operand']
  %s0 = inlined_call_operand.hbm [shape: bf16[16,32], index: 0, kind: input, shape index: {}]
  %s1 = inlined_call_operand.vmem [shape: f32[1,32], index: 1, kind: input, shape index: {}]
  %s2 = inlined_call_operand.vmem [shape: f32[1,32], index: 2, kind: input, shape index: {}]
  %s3 = inlined_call_operand.hbm [shape: bf16[32,32], index: 3, kind: input, shape index: {}]
  %s4 = inlined_call_operand.hbm [shape: bf16[16,32], index: 4, kind: output, shape index: {}]
  %s5 = sld [smem:[#allocation0]]
  $region38: #{tpu_custom_call.1} parent=0
    _
  %s7 = ssub.s32 1, %s5
  %s8 = scalar_select 0, %s7, %s5
  $region1: #{tpu_custom_call.1} parent=0
    #allocation3 [shape = 'u8[4096]{0}', space=vmem, size = 0x1000, scoped, tag = 'input window, operand 0, single buffered']
    #allocation4 [shape = 's32[1]{0}', space=sflag, size = 0x4, scoped, tag = 'scoped memory for tpu_custom_call.1']
    #allocation5 [shape = 's32[1]{0}', space=sflag, size = 0x4, scoped, tag = 'scoped memory for tpu_custom_call.1']
    #allocation6 [shape = 'u8[8192]{0}', space=vmem, size = 0x2000, scoped, tag = 'input window, operand 3, single buffered']
    #allocation7 [shape = 's32[1]{0}', space=sflag, size = 0x4, scoped, tag = 'scoped memory for tpu_custom_call.1']
    #allocation8 [shape = 'u8[4096]{0}', space=vmem, size = 0x1000, scoped, tag = 'output window, operand 0, single buffered']
    %9 = vsyncpa [#allocation4], 0
    %10 = vsyncpa [#allocation7], 0
    %11 = vsyncpa [#allocation5], 0
    // Predicated region
    $region2: #{tpu_custom_call.1} parent=1 // pred_check
      _
    $region3: #{tpu_custom_call.1} parent=1 // pred_check_branch
      %13 = sbr.rel (0) target = $region5
    $region4: #{tpu_custom_call.1} parent=1 // pred_region
      %s15 = ssub.s32 128, 128
      %16 = vsyncadd [#allocation4], %s15
      %s17 = sshll.u32 [#allocation3], 4
      %s18 = int_to_ptr.vmem [resolvable:$true] %s17
      %23 = dma.hbm_to_vmem [thread:$0]  %s0, 128, %s18, [#allocation4], 64, 64, 4
    $region5: #{tpu_custom_call.1} parent=1 // pred_fallthru
      _
    // Predicated region
    $region6: #{tpu_custom_call.1} parent=1 // pred_check
      _
    $region7: #{tpu_custom_call.1} parent=1 // pred_check_branch
      %25 = sbr.rel (0) target = $region9
    $region8: #{tpu_custom_call.1} parent=1 // pred_region
      _
    $region9: #{tpu_custom_call.1} parent=1 // pred_fallthru
      _
    // Predicated region
    $region10: #{tpu_custom_call.1} parent=1 // pred_check
      _
    $region11: #{tpu_custom_call.1} parent=1 // pred_check_branch
      %27 = sbr.rel (0) target = $region13
    $region12: #{tpu_custom_call.1} parent=1 // pred_region
      _
    $region13: #{tpu_custom_call.1} parent=1 // pred_fallthru
      _
    // Predicated region
    $region14: #{tpu_custom_call.1} parent=1 // pred_check
      _
    $region15: #{tpu_custom_call.1} parent=1 // pred_check_branch
      %29 = sbr.rel (0) target = $region17
    $region16: #{tpu_custom_call.1} parent=1 // pred_region
      %s31 = ssub.s32 256, 256
      %32 = vsyncadd [#allocation7], %s31
      %s33 = sshll.u32 [#allocation6], 4
      %s34 = int_to_ptr.vmem [resolvable:$true] %s33
      %39 = dma.hbm_to_vmem [thread:$0]  %s3, 256, %s34, [#allocation7], 64, 64, 4
    $region17: #{tpu_custom_call.1} parent=1 // pred_fallthru
      _
    // Predicated region
    $region18: #{tpu_custom_call.1} parent=1 // pred_check
      _
    $region19: #{tpu_custom_call.1} parent=1 // pred_check_branch
      %41 = sbr.rel (0) target = $region21
    $region20: #{tpu_custom_call.1} parent=1 // pred_region
      %42 = dma.done [#allocation4], 128
    $region21: #{tpu_custom_call.1} parent=1 // pred_fallthru
      _
    // Predicated region
    $region22: #{tpu_custom_call.1} parent=1 // pred_check
      _
    $region23: #{tpu_custom_call.1} parent=1 // pred_check_branch
      %44 = sbr.rel (0) target = $region25
    $region24: #{tpu_custom_call.1} parent=1 // pred_region
      %45 = dma.done [#allocation7], 256
    $region25: #{tpu_custom_call.1} parent=1 // pred_fallthru
      _
    %p47 = scmp.eq.s32.totalorder 0, 0
    // Predicated region
    $region26: #{tpu_custom_call.1} parent=1 // pred_check
      %p48 = pneg %p47
    $region27: #{tpu_custom_call.1} parent=1 // pred_check_branch
      %50 = sbr.rel (%p48) target = $region29
    $region28: #{tpu_custom_call.1} parent=1 // pred_region
      %v51 = vld [vmem:[#allocation3] sm:$0xf]
      %v52 = vld [vmem:[#allocation3 + $0x4] sm:$0xf]
      %v53 = vunpack.c.l.bf16 %v51
      %v54 = vunpack.c.l.bf16 %v52
      %vm55 = vcmask 261120
      %v56 = vsel %vm55, %v53, 0.0
      %57 = vadd.xlane.f32.xlu0 %v56
      %v58 = vpop.xlane.xlu0 %57
      %v59 = vsel %vm55, %v54, 0.0
      %60 = vadd.xlane.f32.xlu0 %v59
      %v61 = vpop.xlane.xlu0 %60
      %v62 = vrcp.pop 32.0
      %v63 = vmul.f32 %v58, %v62
      %v64 = vmul.f32 %v61, %v62
      %v65 = vsub.f32 %v53, %v63
      %v66 = vsub.f32 %v54, %v64
      %v67 = vmul.f32 %v65, %v65
      %v68 = vmul.f32 %v66, %v66
      %v69 = vsel %vm55, %v67, 0.0
      %70 = vadd.xlane.f32.xlu0 %v69
      %v71 = vpop.xlane.xlu0 %70
      %v72 = vsel %vm55, %v68, 0.0
      %73 = vadd.xlane.f32.xlu0 %v72
      %v74 = vpop.xlane.xlu0 %73
      %v75 = vmul.f32 %v71, %v62
      %v76 = vmul.f32 %v74, %v62
      %v77 = vadd.f32 %v75, 1e-05
      %v78 = vadd.f32 %v76, 1e-05
      %v79 = vrsqrt.pop %v77
      %v80 = vrsqrt.pop %v78
      %v81 = vmul.f32 %v65, %v79
      %v82 = vmul.f32 %v66, %v80
      %v83 = vld [vmem:[%s1] sm:$0x1]
      %v85 = vlaneseq
      %v86 = vshrl.u32 %v85, 7
      %v87 = vsub.s32 0, %v86
      %v88 = vrot.slane %v83, %v87
      %v90 = vmul.f32 %v81, %v88
      %v91 = vmul.f32 %v82, %v88
      %v92 = vld [vmem:[%s2] sm:$0x1]
      %v94 = vlaneseq
      %v95 = vshrl.u32 %v94, 7
      %v96 = vsub.s32 0, %v95
      %v97 = vrot.slane %v92, %v96
      %v99 = vadd.f32 %v90, %v97
      %v100 = vadd.f32 %v91, %v97
      %v101 = vpack.c.bf16 %v100, %v99
      %102 = vst.msk [vmem:[#allocation2] sm:$0xff] %vm55, %v101
    $region29: #{tpu_custom_call.1} parent=1 // pred_fallthru
      _
    %v103 = vld [vmem:[#allocation2] sm:$0xff]
    %v104 = vld [vmem:[#allocation6] sm:$0xf]
    %v105 = vld [vmem:[#allocation6 + $0x4] sm:$0xf]
    %v106 = vld [vmem:[#allocation6 + $0x8] sm:$0xf]
    %v107 = vld [vmem:[#allocation6 + $0xc] sm:$0xf]
    %v112 = vunpack.c.l.b16 %v104
    %v113 = vunpack.c.l.b16 %v105
    %v114 = vunpack.c.l.b16 %v106
    %v115 = vunpack.c.l.b16 %v107
    %v116 = vpack.c.b16 %v113, %v112
    %v117 = vpack.c.b16 %v115, %v114
    %vm120 = vcmask 261120
    %v122 = vsel %vm120, %v103, 0
    %124 = vmatprep.subr.bf16.mxu0 0
    %125 = vmatpush1.bf16.msra.mxu0 %v116
    %126 = vmatprep.subr.bf16.mxu0 0
    %127 = vmatpush1.bf16.msra.mxu0 %v117
    %128 = vmatprep.subr.bf16.mxu0 0
    %129 = vmatpush1.bf16.msra.mxu0 0
    %130 = vmatprep.subr.bf16.mxu0 0
    %131 = vmatpush1.bf16.msra.mxu0 0
    %132 = vmatprep.subr.bf16.mxu0 0
    %133 = vmatpush1.bf16.msra.mxu0 0
    %134 = vmatprep.subr.bf16.mxu0 0
    %135 = vmatpush1.bf16.msra.mxu0 0
    %136 = vmatprep.subr.bf16.mxu0 0
    %137 = vmatpush1.bf16.msra.mxu0 0
    %138 = vmatprep.subr.bf16.mxu0 0
    %139 = vmatpush1.bf16.msra.mxu0 0
    %140 = vmatprep.subr.bf16.mxu0 0
    %141 = vmatpush1.bf16.msra.mxu0 0
    %142 = vmatprep.subr.bf16.mxu0 0
    %143 = vmatpush1.bf16.msra.mxu0 0
    %144 = vmatprep.subr.bf16.mxu0 0
    %145 = vmatpush1.bf16.msra.mxu0 0
    %146 = vmatprep.subr.bf16.mxu0 0
    %147 = vmatpush1.bf16.msra.mxu0 0
    %148 = vmatprep.subr.bf16.mxu0 0
    %149 = vmatpush1.bf16.msra.mxu0 0
    %150 = vmatprep.subr.bf16.mxu0 0
    %151 = vmatpush1.bf16.msra.mxu0 0
    %152 = vmatprep.subr.bf16.mxu0 0
    %153 = vmatpush1.bf16.msra.mxu0 0
    %154 = vmatprep.subr.bf16.mxu0 0
    %155 = vmatpush1.bf16.msra.mxu0 0
    %156 = vmatprep.mubr.bf16.mxu0 0
    %157 = vmatmul.mubr.bf16.gmra.mrb[0].mxu0 %v122
    %v158 = vpop.f32.mrb[0].mxu0
    %v159 = vadd.f32 0.0, %v158
    %v160 = vpop.f32.mrb[0].mxu0
    %v161 = vpop.f32.mrb[0].mxu0
    %v162 = vadd.f32 0.0, %v161
    %v163 = vpop.f32.mrb[0].mxu0
    %164 = vdwg.mxu0
    %v165 = vpack.c.bf16 %v162, %v159
    %v167 = vunpack.c.l.b16 %v165
    %v168 = vunpack.c.h.b16 %v165
    %v169 = vpack.c.b16 %v167, %v167
    %v170 = vpack.c.b16 %v168, %v168
    %vm173 = vcmask 257024
    %174 = vst.msk [vmem:[#allocation8] sm:$0xf] %vm173, %v169
    %175 = vst.msk [vmem:[#allocation8 + $0x4] sm:$0xf] %vm173, %v170
    // Predicated region
    $region30: #{tpu_custom_call.1} parent=1 // pred_check
      _
    $region31: #{tpu_custom_call.1} parent=1 // pred_check_branch
      %177 = sbr.rel (0) target = $region33
    $region32: #{tpu_custom_call.1} parent=1 // pred_region
      %s179 = ssub.s32 128, 128
      %180 = vsyncadd [#allocation5], %s179
      %s181 = sshll.u32 [#allocation8], 4
      %s182 = int_to_ptr.vmem [resolvable:$true] %s181
      %187 = dma.vmem_to_hbm [thread:$0]  %s182, 128, %s4, [#allocation5], 64, 64, 4
    $region33: #{tpu_custom_call.1} parent=1 // pred_fallthru
      _
    // Predicated region
    $region34: #{tpu_custom_call.1} parent=1 // pred_check
      _
    $region35: #{tpu_custom_call.1} parent=1 // pred_check_branch
      %189 = sbr.rel (0) target = $region37
    $region36: #{tpu_custom_call.1} parent=1 // pred_region
      %190 = dma.done [#allocation5], 128
    $region37: #{tpu_custom_call.1} parent=1 // pred_fallthru
      _
    %191 = vsyncpa [#allocation4], 1
    %192 = vsyncpa [#allocation7], 1
    %193 = vsyncpa [#allocation5], 1

</llo_original>
